<compile_context>
chip_gen: v7x
topology: tpu7x:2x2x1
jax: 0.10.0
libtpu: 0.0.40
codegen_flags: <defaults>
</compile_context>

<pallas_src>
import functools

import jax
import jax.numpy as jnp
from jax.experimental import pallas as pl
from jax.experimental.pallas import tpu as pltpu


# ---------------------------------------------------------------------------
# Pallas kernel: embedding gather + one GRU step + Linear + LogSoftmax
# ---------------------------------------------------------------------------
def _decoder_step_kernel(idx_ref, enc_ref, h_ref, emb_hbm,
                         wxe_ref, wxw_ref, bx_ref, bhn_ref, whh_ref,
                         wlin_ref, blin_ref,
                         logp_ref, hnew_ref,
                         emb_buf, emb_sem, *, hidden_size, batch):
    # idx_ref:  (B,)      int32 in SMEM (last word index per batch row)
    # enc_ref:  (B, H)    encoder hidden, f32 VMEM
    # h_ref:    (B, H)    previous GRU hidden, f32 VMEM
    # emb_hbm:  (V, D)    embedding table, stays in HBM (ANY); rows DMA-gathered below
    # wxe_ref:  (H, 3H)   input->hidden weights fed by encoder-hidden part of x   bf16
    # wxw_ref:  (D, 3H)   input->hidden weights fed by word-embedding part of x   bf16
    # bx_ref:   (1, 3H)   [b_ir+b_hr | b_iz+b_hz | b_in]                          f32
    # bhn_ref:  (1, H)    b_hn (must stay inside r * (W_hn h + b_hn))             f32
    # whh_ref:  (H, 3H)   hidden->hidden weights                                  bf16
    # wlin_ref: (H, V)    classifier weight (tight, no row padding)               bf16
    # blin_ref: (1, V)    classifier bias                                         f32
    H = hidden_size

    # ---- In-kernel embedding row gather: B small DMAs from HBM, indices read from SMEM ----
    copies = []
    for b in range(batch):
        cp = pltpu.make_async_copy(
            emb_hbm.at[pl.ds(idx_ref[b], 1), :],   # (1, D) row of the table
            emb_buf.at[pl.ds(b, 1), :],            # (1, D) destination row
            emb_sem.at[b])
        cp.start()
        copies.append(cp)
    for cp in copies:
        cp.wait()

    enc = enc_ref[...]            # (B, H) f32
    emb = emb_buf[...]            # (B, D) f32  (dropout is identity in eval mode)
    h = h_ref[...]                # (B, H) f32

    # Gate pre-activations: two tight bf16 dots for the input path (concat replaced by a row
    # split of W_ih), one f32 dot for the hidden path (h never leaves f32).
    gx = (jnp.dot(enc.astype(jnp.bfloat16), wxe_ref[...],
                  preferred_element_type=jnp.float32)
          + jnp.dot(emb.astype(jnp.bfloat16), wxw_ref[...],
                    preferred_element_type=jnp.float32)
          + bx_ref[...])                                          # (B, 3H)
    gh = jnp.dot(h, whh_ref[...].astype(jnp.float32),
                 preferred_element_type=jnp.float32)              # (B, 3H)

    # PyTorch nn.GRU equations (gate order r, z, n).
    r = jax.nn.sigmoid(gx[:, 0:H] + gh[:, 0:H])
    z = jax.nn.sigmoid(gx[:, H:2 * H] + gh[:, H:2 * H])
    n = jnp.tanh(gx[:, 2 * H:3 * H] + r * (gh[:, 2 * H:3 * H] + bhn_ref[...]))
    h_new = (1.0 - z) * n + z * h                                 # (B, H) f32
    hnew_ref[...] = h_new

    # Classifier + numerically stable log-softmax over the vocab dim (f32).
    logits = (jnp.dot(h_new.astype(jnp.bfloat16), wlin_ref[...],
                      preferred_element_type=jnp.float32) + blin_ref[...])
    m = jnp.max(logits, axis=-1, keepdims=True)
    shifted = logits - m
    lse = jnp.log(jnp.sum(jnp.exp(shifted), axis=-1, keepdims=True))
    logp_ref[...] = (shifted - lse).astype(logp_ref.dtype)


# ---------------------------------------------------------------------------
# Decoder module (parameters + thin glue in JAX, hot path in Pallas)
# ---------------------------------------------------------------------------
class DecoderPallas:
    def __init__(self, response_word_num, word_emb_size, rnn_hidden_size, key):
        self.vocab = response_word_num
        self.word_dim = word_emb_size
        self.hidden_size = rnn_hidden_size
        h, d, v = rnn_hidden_size, word_emb_size, response_word_num
        in_size = h + d

        k_emb, k_wih, k_whh, k_bih, k_bhh, k_wl, k_bl = jax.random.split(key, 7)
        bound = 1.0 / jnp.sqrt(jnp.float32(h))

        # nn.Embedding: N(0, 1) init; table stays f32 in HBM, rows are DMA-gathered in kernel.
        self.word_emb = jax.random.normal(k_emb, (v, d), jnp.float32)

        # nn.GRU weights (gate order r, z, n), uniform(-1/sqrt(H), 1/sqrt(H)),
        # generated pre-transposed for right-multiplication.
        w_ih_t = jax.random.uniform(k_wih, (in_size, 3 * h), jnp.float32, -bound, bound)
        w_hh_t = jax.random.uniform(k_whh, (h, 3 * h), jnp.float32, -bound, bound)
        b_ih = jax.random.uniform(k_bih, (3 * h,), jnp.float32, -bound, bound)
        b_hh = jax.random.uniform(k_bhh, (3 * h,), jnp.float32, -bound, bound)

        # x = [encoderHidden ; wordEmb]  -> split W_ih by rows instead of concatenating inputs.
        self.w_xe = w_ih_t[:h, :].astype(jnp.bfloat16)        # (H, 3H)
        self.w_xw = w_ih_t[h:, :].astype(jnp.bfloat16)        # (D, 3H)
        self.w_hh = w_hh_t.astype(jnp.bfloat16)               # (H, 3H)
        # r/z input+hidden biases fused; n keeps b_in on the input side, b_hn on the hidden side.
        self.b_x = jnp.concatenate(
            [b_ih[0:h] + b_hh[0:h],
             b_ih[h:2 * h] + b_hh[h:2 * h],
             b_ih[2 * h:3 * h]]).reshape(1, 3 * h)             # (1, 3H) f32
        self.b_hn = b_hh[2 * h:3 * h].reshape(1, h)            # (1, H)  f32

        # nn.Linear(H, vocab), uniform(-1/sqrt(H), 1/sqrt(H)); tight rows, no padding.
        self.w_lin = jax.random.uniform(k_wl, (h, v), jnp.float32,
                                        -bound, bound).astype(jnp.bfloat16)   # (H, V)
        self.b_lin = jax.random.uniform(k_bl, (1, v), jnp.float32, -bound, bound)

    def init_hidden(self, batch=1):
        return jnp.zeros((1, batch, self.hidden_size), jnp.float32)

    def _step(self, idx, enc, h0):
        batch = enc.shape[0]
        h, d, v = self.hidden_size, self.word_dim, self.vocab

        flops = 2 * batch * (h * 3 * h + d * 3 * h + h * 3 * h + h * v)
        transcendentals = batch * (v + 3 * h)
        weight_bytes = 2 * (self.w_xe.size + self.w_xw.size + self.w_hh.size + self.w_lin.size)
        act_bytes = 4 * (self.b_x.size + self.b_hn.size + self.b_lin.size
                         + enc.size + h0.size + batch * d + batch * v + batch * h + batch)
        cost = pl.CostEstimate(flops=flops, transcendentals=transcendentals,
                               bytes_accessed=weight_bytes + act_bytes)
        # Generous but explicit VMEM budget (weights grow with vocab; v5e scoped default is 16 MiB).
        vmem_limit = int(min(100 * 1024 * 1024,
                             max(16 * 1024 * 1024, 2 * (weight_bytes + act_bytes))))

        vmem = pl.BlockSpec(memory_space=pltpu.MemorySpace.VMEM)
        smem = pl.BlockSpec(memory_space=pltpu.MemorySpace.SMEM)
        anyspace = pl.BlockSpec(memory_space=pl.ANY)
        kernel = functools.partial(_decoder_step_kernel, hidden_size=h, batch=batch)

        return pl.pallas_call(
            kernel,
            out_shape=(jax.ShapeDtypeStruct((batch, v), jnp.float32),
                       jax.ShapeDtypeStruct((batch, h), jnp.float32)),
            in_specs=[smem, vmem, vmem, anyspace,
                      vmem, vmem, vmem, vmem, vmem, vmem, vmem],
            out_specs=(vmem, vmem),
            scratch_shapes=[pltpu.VMEM((batch, d), jnp.float32),
                            pltpu.SemaphoreType.DMA((batch,))],
            cost_estimate=cost,
            compiler_params=pltpu.CompilerParams(vmem_limit_bytes=vmem_limit),
        )(idx, enc, h0, self.word_emb,
          self.w_xe, self.w_xw, self.b_x, self.b_hn, self.w_hh,
          self.w_lin, self.b_lin)

    @functools.partial(jax.jit, static_argnums=0)
    def forward(self, encoder_hidden, hidden, last_word_index):
        # encoder_hidden: (1, B, H), hidden: (1, B, H), last_word_index: (B, 1) int32
        idx = last_word_index.reshape(-1).astype(jnp.int32)   # (B,) — safe for B == 1
        enc = encoder_hidden[0]                                # (B, H)
        h0 = hidden[0]                                         # (B, H)
        logp, h_new = self._step(idx, enc, h0)
        return logp, h_new[None, :, :]

    # Pure-JAX reference of the identical (bf16-weight) computation.
    def reference_forward(self, encoder_hidden, hidden, last_word_index):
        H = self.hidden_size
        idx = last_word_index.reshape(-1).astype(jnp.int32)
        enc = encoder_hidden[0]
        h = hidden[0]
        emb = jnp.take(self.word_emb, idx, axis=0)            # dropout == identity (eval)
        gx = (jnp.dot(enc.astype(jnp.bfloat16), self.w_xe, preferred_element_type=jnp.float32)
              + jnp.dot(emb.astype(jnp.bfloat16), self.w_xw, preferred_element_type=jnp.float32)
              + self.b_x)
        gh = jnp.dot(h, self.w_hh.astype(jnp.float32), preferred_element_type=jnp.float32)
        r = jax.nn.sigmoid(gx[:, 0:H] + gh[:, 0:H])
        z = jax.nn.sigmoid(gx[:, H:2 * H] + gh[:, H:2 * H])
        n = jnp.tanh(gx[:, 2 * H:3 * H] + r * (gh[:, 2 * H:3 * H] + self.b_hn))
        h_new = (1.0 - z) * n + z * h
        logits = (jnp.dot(h_new.astype(jnp.bfloat16), self.w_lin,
                          preferred_element_type=jnp.float32) + self.b_lin)
        logp = jax.nn.log_softmax(logits, axis=-1)
        return logp, h_new[None, :, :]


if __name__ == "__main__":
    # Small, forward-implied shapes.
    batch = 2
    rnn_hidden_size = 32
    word_emb_size = 32
    response_word_num = 256

    key = jax.random.PRNGKey(0)
    k_model, k_enc, k_h, k_idx = jax.random.split(key, 4)

    dec = DecoderPallas(response_word_num, word_emb_size, rnn_hidden_size, k_model)

    encoder_hidden = jax.random.normal(k_enc, (1, batch, rnn_hidden_size), jnp.float32)
    hidden = 0.1 * jax.random.normal(k_h, (1, batch, rnn_hidden_size), jnp.float32)
    last_word_index = jax.random.randint(
        k_idx, (batch, 1), 0, response_word_num, jnp.int32)

    logp, new_hidden = dec.forward(encoder_hidden, hidden, last_word_index)
    logp = jax.block_until_ready(logp)
    new_hidden = jax.block_until_ready(new_hidden)

    assert logp.shape == (batch, response_word_num)
    assert new_hidden.shape == (1, batch, rnn_hidden_size)
    assert bool(jnp.all(jnp.isfinite(logp)))
    # log-softmax rows must exponentiate-sum to ~1
    row_sums = jnp.exp(logp).sum(axis=-1)
    assert bool(jnp.all(jnp.abs(row_sums - 1.0) < 1e-4))

    # Cross-check against the pure-JAX reference of the same computation.
    ref_logp, ref_hidden = dec.reference_forward(encoder_hidden, hidden, last_word_index)
    assert bool(jnp.max(jnp.abs(logp - ref_logp)) < 5e-3)
    assert bool(jnp.max(jnp.abs(new_hidden - ref_hidden)) < 5e-3)

    print("KERNEL_OK")
</pallas_src>

<mosaic_0001>
module attributes {stable_mosaic.version = 11 : i64} {
  func.func @_decoder_step_kernel(%arg0: memref<2xi32, #tpu.memory_space<smem>>, %arg1: memref<2x32xf32, #tpu.memory_space<vmem>>, %arg2: memref<2x32xf32, #tpu.memory_space<vmem>>, %arg3: memref<256x32xf32, #tpu.memory_space<any>>, %arg4: memref<32x96xbf16, #tpu.memory_space<vmem>>, %arg5: memref<32x96xbf16, #tpu.memory_space<vmem>>, %arg6: memref<1x96xf32, #tpu.memory_space<vmem>>, %arg7: memref<1x32xf32, #tpu.memory_space<vmem>>, %arg8: memref<32x96xbf16, #tpu.memory_space<vmem>>, %arg9: memref<32x256xbf16, #tpu.memory_space<vmem>>, %arg10: memref<1x256xf32, #tpu.memory_space<vmem>>, %arg11: memref<2x256xf32, #tpu.memory_space<vmem>>, %arg12: memref<2x32xf32, #tpu.memory_space<vmem>>, %arg13: memref<2x32xf32, #tpu.memory_space<vmem>>, %arg14: memref<2x!tpu.dma_semaphore, #tpu.memory_space<semaphore_mem>>) attributes {dimension_semantics = [], scalar_prefetch = 0 : i64, scratch_operands = 2 : i64, tpu.core_type = #tpu.core_type<tc>} {
    %c0 = arith.constant 0 : index
    %0 = memref.load %arg0[%c0] : memref<2xi32, #tpu.memory_space<smem>>
    %c0_i32 = arith.constant 0 : i32
    %c0_i32_0 = arith.constant 0 : i32
    %1 = tpu.memref_slice %arg3[%0, %c0_i32_0] : memref<256x32xf32, #tpu.memory_space<any>> -> memref<1x32xf32, #tpu.memory_space<any>>
    %c0_i32_1 = arith.constant 0 : i32
    %c0_i32_2 = arith.constant 0 : i32
    %2 = tpu.memref_slice %arg13[%c0_i32_1, %c0_i32_2] : memref<2x32xf32, #tpu.memory_space<vmem>> -> memref<1x32xf32, #tpu.memory_space<vmem>>
    %3 = tpu.memref_slice %arg14[%c0_i32] : memref<2x!tpu.dma_semaphore, #tpu.memory_space<semaphore_mem>> -> memref<1x!tpu.dma_semaphore, #tpu.memory_space<semaphore_mem>>
    %4 = tpu.memref_squeeze %3 : memref<1x!tpu.dma_semaphore, #tpu.memory_space<semaphore_mem>> -> memref<!tpu.dma_semaphore, #tpu.memory_space<semaphore_mem>>
    tpu.enqueue_dma source(%1 : memref<1x32xf32, #tpu.memory_space<any>>) target(%2 : memref<1x32xf32, #tpu.memory_space<vmem>>) target_semaphore(%4 : memref<!tpu.dma_semaphore, #tpu.memory_space<semaphore_mem>>)
    %c1 = arith.constant 1 : index
    %5 = memref.load %arg0[%c1] : memref<2xi32, #tpu.memory_space<smem>>
    %c1_i32 = arith.constant 1 : i32
    %c0_i32_3 = arith.constant 0 : i32
    %6 = tpu.memref_slice %arg3[%5, %c0_i32_3] : memref<256x32xf32, #tpu.memory_space<any>> -> memref<1x32xf32, #tpu.memory_space<any>>
    %c1_i32_4 = arith.constant 1 : i32
    %c0_i32_5 = arith.constant 0 : i32
    %7 = tpu.memref_slice %arg13[%c1_i32_4, %c0_i32_5] : memref<2x32xf32, #tpu.memory_space<vmem>> -> memref<1x32xf32, #tpu.memory_space<vmem>>
    %8 = tpu.memref_slice %arg14[%c1_i32] : memref<2x!tpu.dma_semaphore, #tpu.memory_space<semaphore_mem>> -> memref<1x!tpu.dma_semaphore, #tpu.memory_space<semaphore_mem>>
    %9 = tpu.memref_squeeze %8 : memref<1x!tpu.dma_semaphore, #tpu.memory_space<semaphore_mem>> -> memref<!tpu.dma_semaphore, #tpu.memory_space<semaphore_mem>>
    tpu.enqueue_dma source(%6 : memref<1x32xf32, #tpu.memory_space<any>>) target(%7 : memref<1x32xf32, #tpu.memory_space<vmem>>) target_semaphore(%9 : memref<!tpu.dma_semaphore, #tpu.memory_space<semaphore_mem>>)
    %c0_i32_6 = arith.constant 0 : i32
    %c0_i32_7 = arith.constant 0 : i32
    %10 = tpu.memref_slice %arg3[%0, %c0_i32_7] : memref<256x32xf32, #tpu.memory_space<any>> -> memref<1x32xf32, #tpu.memory_space<any>>
    %c0_i32_8 = arith.constant 0 : i32
    %c0_i32_9 = arith.constant 0 : i32
    %11 = tpu.memref_slice %arg13[%c0_i32_8, %c0_i32_9] : memref<2x32xf32, #tpu.memory_space<vmem>> -> memref<1x32xf32, #tpu.memory_space<vmem>>
    %12 = tpu.memref_slice %arg14[%c0_i32_6] : memref<2x!tpu.dma_semaphore, #tpu.memory_space<semaphore_mem>> -> memref<1x!tpu.dma_semaphore, #tpu.memory_space<semaphore_mem>>
    %13 = tpu.memref_squeeze %12 : memref<1x!tpu.dma_semaphore, #tpu.memory_space<semaphore_mem>> -> memref<!tpu.dma_semaphore, #tpu.memory_space<semaphore_mem>>
    tpu.wait_dma2 semaphore(%13 : memref<!tpu.dma_semaphore, #tpu.memory_space<semaphore_mem>>) src(%10 : memref<1x32xf32, #tpu.memory_space<any>>) dst(%11 : memref<1x32xf32, #tpu.memory_space<vmem>>)
    %c1_i32_10 = arith.constant 1 : i32
    %c0_i32_11 = arith.constant 0 : i32
    %14 = tpu.memref_slice %arg3[%5, %c0_i32_11] : memref<256x32xf32, #tpu.memory_space<any>> -> memref<1x32xf32, #tpu.memory_space<any>>
    %c1_i32_12 = arith.constant 1 : i32
    %c0_i32_13 = arith.constant 0 : i32
    %15 = tpu.memref_slice %arg13[%c1_i32_12, %c0_i32_13] : memref<2x32xf32, #tpu.memory_space<vmem>> -> memref<1x32xf32, #tpu.memory_space<vmem>>
    %16 = tpu.memref_slice %arg14[%c1_i32_10] : memref<2x!tpu.dma_semaphore, #tpu.memory_space<semaphore_mem>> -> memref<1x!tpu.dma_semaphore, #tpu.memory_space<semaphore_mem>>
    %17 = tpu.memref_squeeze %16 : memref<1x!tpu.dma_semaphore, #tpu.memory_space<semaphore_mem>> -> memref<!tpu.dma_semaphore, #tpu.memory_space<semaphore_mem>>
    tpu.wait_dma2 semaphore(%17 : memref<!tpu.dma_semaphore, #tpu.memory_space<semaphore_mem>>) src(%14 : memref<1x32xf32, #tpu.memory_space<any>>) dst(%15 : memref<1x32xf32, #tpu.memory_space<vmem>>)
    %c0_14 = arith.constant 0 : index
    %c0_15 = arith.constant 0 : index
    %18 = vector.load %arg1[%c0_14, %c0_15] : memref<2x32xf32, #tpu.memory_space<vmem>>, vector<2x32xf32>
    %c0_16 = arith.constant 0 : index
    %c0_17 = arith.constant 0 : index
    %19 = vector.load %arg13[%c0_16, %c0_17] : memref<2x32xf32, #tpu.memory_space<vmem>>, vector<2x32xf32>
    %c0_18 = arith.constant 0 : index
    %c0_19 = arith.constant 0 : index
    %20 = vector.load %arg2[%c0_18, %c0_19] : memref<2x32xf32, #tpu.memory_space<vmem>>, vector<2x32xf32>
    %21 = arith.truncf %18 : vector<2x32xf32> to vector<2x32xbf16>
    %c0_20 = arith.constant 0 : index
    %c0_21 = arith.constant 0 : index
    %22 = vector.load %arg4[%c0_20, %c0_21] : memref<32x96xbf16, #tpu.memory_space<vmem>>, vector<32x96xbf16>
    %cst = arith.constant dense<0.000000e+00> : vector<2x96xf32>
    %23 = tpu.matmul %21, %22, %cst {dimension_numbers = #tpu.dot_dimension_numbers<[1], [0], [0], [1], [0, 0, 1, 1], [], []>} : vector<2x32xbf16>, vector<32x96xbf16>, vector<2x96xf32> -> vector<2x96xf32>
    %24 = arith.truncf %19 : vector<2x32xf32> to vector<2x32xbf16>
    %c0_22 = arith.constant 0 : index
    %c0_23 = arith.constant 0 : index
    %25 = vector.load %arg5[%c0_22, %c0_23] : memref<32x96xbf16, #tpu.memory_space<vmem>>, vector<32x96xbf16>
    %cst_24 = arith.constant dense<0.000000e+00> : vector<2x96xf32>
    %26 = tpu.matmul %24, %25, %cst_24 {dimension_numbers = #tpu.dot_dimension_numbers<[1], [0], [0], [1], [0, 0, 1, 1], [], []>} : vector<2x32xbf16>, vector<32x96xbf16>, vector<2x96xf32> -> vector<2x96xf32>
    %27 = arith.addf %23, %26 : vector<2x96xf32>
    %c0_25 = arith.constant 0 : index
    %c0_26 = arith.constant 0 : index
    %28 = vector.load %arg6[%c0_25, %c0_26] : memref<1x96xf32, #tpu.memory_space<vmem>>, vector<1x96xf32>
    %29 = vector.broadcast %28 : vector<1x96xf32> to vector<2x96xf32>
    %30 = arith.addf %27, %29 : vector<2x96xf32>
    %c0_27 = arith.constant 0 : index
    %c0_28 = arith.constant 0 : index
    %31 = vector.load %arg8[%c0_27, %c0_28] : memref<32x96xbf16, #tpu.memory_space<vmem>>, vector<32x96xbf16>
    %32 = arith.extf %31 : vector<32x96xbf16> to vector<32x96xf32>
    %cst_29 = arith.constant dense<0.000000e+00> : vector<2x96xf32>
    %33 = tpu.matmul %20, %32, %cst_29 {dimension_numbers = #tpu.dot_dimension_numbers<[1], [0], [0], [1], [0, 0, 1, 1], [], []>} : vector<2x32xf32>, vector<32x96xf32>, vector<2x96xf32> -> vector<2x96xf32>
    %34 = vector.extract_strided_slice %30 {offsets = [0, 0], sizes = [2, 32], strides = [1, 1]} : vector<2x96xf32> to vector<2x32xf32>
    %35 = vector.extract_strided_slice %33 {offsets = [0, 0], sizes = [2, 32], strides = [1, 1]} : vector<2x96xf32> to vector<2x32xf32>
    %36 = arith.addf %34, %35 : vector<2x32xf32>
    %37 = arith.negf %36 : vector<2x32xf32>
    %38 = math.exp %37 : vector<2x32xf32>
    %cst_30 = arith.constant 1.000000e+00 : f32
    %39 = vector.broadcast %cst_30 : f32 to vector<2x32xf32>
    %40 = arith.addf %39, %38 : vector<2x32xf32>
    %41 = arith.divf %39, %40 : vector<2x32xf32>
    %42 = vector.extract_strided_slice %30 {offsets = [0, 32], sizes = [2, 32], strides = [1, 1]} : vector<2x96xf32> to vector<2x32xf32>
    %43 = vector.extract_strided_slice %33 {offsets = [0, 32], sizes = [2, 32], strides = [1, 1]} : vector<2x96xf32> to vector<2x32xf32>
    %44 = arith.addf %42, %43 : vector<2x32xf32>
    %45 = arith.negf %44 : vector<2x32xf32>
    %46 = math.exp %45 : vector<2x32xf32>
    %cst_31 = arith.constant 1.000000e+00 : f32
    %47 = vector.broadcast %cst_31 : f32 to vector<2x32xf32>
    %48 = arith.addf %47, %46 : vector<2x32xf32>
    %49 = arith.divf %47, %48 : vector<2x32xf32>
    %50 = vector.extract_strided_slice %30 {offsets = [0, 64], sizes = [2, 32], strides = [1, 1]} : vector<2x96xf32> to vector<2x32xf32>
    %51 = vector.extract_strided_slice %33 {offsets = [0, 64], sizes = [2, 32], strides = [1, 1]} : vector<2x96xf32> to vector<2x32xf32>
    %c0_32 = arith.constant 0 : index
    %c0_33 = arith.constant 0 : index
    %52 = vector.load %arg7[%c0_32, %c0_33] : memref<1x32xf32, #tpu.memory_space<vmem>>, vector<1x32xf32>
    %53 = vector.broadcast %52 : vector<1x32xf32> to vector<2x32xf32>
    %54 = arith.addf %51, %53 : vector<2x32xf32>
    %55 = arith.mulf %41, %54 : vector<2x32xf32>
    %56 = arith.addf %50, %55 : vector<2x32xf32>
    %57 = math.tanh %56 : vector<2x32xf32>
    %cst_34 = arith.constant 1.000000e+00 : f32
    %58 = vector.broadcast %cst_34 : f32 to vector<2x32xf32>
    %59 = arith.subf %58, %49 : vector<2x32xf32>
    %60 = arith.mulf %59, %57 : vector<2x32xf32>
    %61 = arith.mulf %49, %20 : vector<2x32xf32>
    %62 = arith.addf %60, %61 : vector<2x32xf32>
    %c0_35 = arith.constant 0 : index
    %c0_36 = arith.constant 0 : index
    %63 = vector.load %arg12[%c0_35, %c0_36] : memref<2x32xf32, #tpu.memory_space<vmem>>, vector<2x32xf32>
    tpu.vector_store %arg12[%c0_35, %c0_36], %62 {strides = array<i32>} : memref<2x32xf32, #tpu.memory_space<vmem>>, vector<2x32xf32>,
    %64 = arith.truncf %62 : vector<2x32xf32> to vector<2x32xbf16>
    %c0_37 = arith.constant 0 : index
    %c0_38 = arith.constant 0 : index
    %65 = vector.load %arg9[%c0_37, %c0_38] : memref<32x256xbf16, #tpu.memory_space<vmem>>, vector<32x256xbf16>
    %cst_39 = arith.constant dense<0.000000e+00> : vector<2x256xf32>
    %66 = tpu.matmul %64, %65, %cst_39 {dimension_numbers = #tpu.dot_dimension_numbers<[1], [0], [0], [1], [0, 0, 1, 1], [], []>} : vector<2x32xbf16>, vector<32x256xbf16>, vector<2x256xf32> -> vector<2x256xf32>
    %c0_40 = arith.constant 0 : index
    %c0_41 = arith.constant 0 : index
    %67 = vector.load %arg10[%c0_40, %c0_41] : memref<1x256xf32, #tpu.memory_space<vmem>>, vector<1x256xf32>
    %68 = vector.broadcast %67 : vector<1x256xf32> to vector<2x256xf32>
    %69 = arith.addf %66, %68 : vector<2x256xf32>
    %cst_42 = arith.constant dense<0xFF800000> : vector<2xf32>
    %70 = vector.multi_reduction <maximumf>, %69, %cst_42 [1] : vector<2x256xf32> to vector<2xf32>
    %71 = vector.shape_cast %70 : vector<2xf32> to vector<2x1xf32>
    %72 = vector.broadcast %71 : vector<2x1xf32> to vector<2x256xf32>
    %73 = arith.subf %69, %72 : vector<2x256xf32>
    %74 = math.exp %73 : vector<2x256xf32>
    %cst_43 = arith.constant dense<0.000000e+00> : vector<2xf32>
    %75 = vector.multi_reduction <add>, %74, %cst_43 [1] : vector<2x256xf32> to vector<2xf32>
    %76 = vector.shape_cast %75 : vector<2xf32> to vector<2x1xf32>
    %77 = math.log %76 : vector<2x1xf32>
    %78 = vector.broadcast %77 : vector<2x1xf32> to vector<2x256xf32>
    %79 = arith.subf %73, %78 : vector<2x256xf32>
    %c0_44 = arith.constant 0 : index
    %c0_45 = arith.constant 0 : index
    %80 = vector.load %arg11[%c0_44, %c0_45] : memref<2x256xf32, #tpu.memory_space<vmem>>, vector<2x256xf32>
    tpu.vector_store %arg11[%c0_44, %c0_45], %79 {strides = array<i32>} : memref<2x256xf32, #tpu.memory_space<vmem>>, vector<2x256xf32>,
    return
  }
}

</mosaic_0001>

<llo_original>
// kernel: forward.1
$region0: #{forward.1}
  #allocation0 [shape = 'u32[]', space=smem, size = 0x4, offset = 0x4, fixed_abs, tag = 'smem constant byte address 0x4 - core index']
  #allocation1 [shape = 'u32[144,128]{1,0:T(1,128)}', space=vmem, size = 0x12000, scoped, tag = 'internal scratch']
  #allocation2 [shape = 'f32[2,32]{1,0:T(2,128)}', space=vmem, size = 0x400, scoped, tag = 'scratch operand']
  #allocation3 [shape = 's32[2]{0}', space=sflag, size = 0x8, scoped, tag = 'scratch operand']
  #allocation10 [shape = 's32[]', space=sflag, size = 0x4, offset = 0, fixed_abs, tag = 'sflag constant byte address 0x0 - dummy sync flag']
  #allocation11 [shape = 's32[]', space=sflag, size = 0x4, offset = 0, fixed_abs, tag = 'sflag constant byte address 0x0 - dummy sync flag']
  #allocation12 [shape = 'u32[]', space=smem, size = 0x4, offset = 0x44, fixed_abs, tag = 'smem constant byte address 0x44 - assertion arg 0']
  #allocation13 [shape = 'u32[]', space=smem, size = 0x4, offset = 0x48, fixed_abs, tag = 'smem constant byte address 0x48 - assertion arg 1']
  #allocation14 [shape = 's32[]', space=sflag, size = 0x4, offset = 0, fixed_abs, tag = 'sflag constant byte address 0x0 - dummy sync flag']
  #allocation15 [shape = 's32[]', space=sflag, size = 0x4, offset = 0, fixed_abs, tag = 'sflag constant byte address 0x0 - dummy sync flag']
  %s0 = inlined_call_operand.vmem [shape: s32[2], index: 0, kind: input, shape index: {}]
  %s1 = inlined_call_operand.vmem [shape: f32[2,32], index: 1, kind: input, shape index: {}]
  %s2 = inlined_call_operand.vmem [shape: f32[2,32], index: 2, kind: input, shape index: {}]
  %s3 = inlined_call_operand.hbm [shape: f32[256,32], index: 3, kind: input, shape index: {}]
  %s4 = inlined_call_operand.vmem [shape: bf16[32,96], index: 4, kind: input, shape index: {}]
  %s5 = inlined_call_operand.vmem [shape: bf16[32,96], index: 5, kind: input, shape index: {}]
  %s6 = inlined_call_operand.vmem [shape: f32[1,96], index: 6, kind: input, shape index: {}]
  %s7 = inlined_call_operand.vmem [shape: f32[1,32], index: 7, kind: input, shape index: {}]
  %s8 = inlined_call_operand.vmem [shape: bf16[32,96], index: 8, kind: input, shape index: {}]
  %s9 = inlined_call_operand.vmem [shape: bf16[32,256], index: 9, kind: input, shape index: {}]
  %s10 = inlined_call_operand.vmem [shape: f32[1,256], index: 10, kind: input, shape index: {}]
  %s11 = inlined_call_operand.hbm [shape: f32[2,256], index: 11, kind: output, shape index: {0}]
  %s12 = inlined_call_operand.hbm [shape: f32[2,32], index: 12, kind: output, shape index: {1}]
  %13 = xla_tuple %s11, %s12
  %s14 = sld [smem:[#allocation0]]
  $region70: #{forward.1} parent=0
    _
  %s16 = ssub.s32 1, %s14
  %s17 = scalar_select 0, %s16, %s14
  $region1: #{forward.1} parent=0
    #allocation4 [shape = 'u8[512]{0}', space=smem, size = 0x200, scoped, tag = 'input window, operand 0, single buffered']
    #allocation5 [shape = 's32[1]{0}', space=sflag, size = 0x4, scoped, tag = 'scoped memory for forward.1']
    #allocation6 [shape = 's32[1]{0}', space=sflag, size = 0x4, scoped, tag = 'scoped memory for forward.1']
    #allocation7 [shape = 'u8[2048]{0}', space=vmem, size = 0x800, scoped, tag = 'output window, operand 0, single buffered']
    #allocation8 [shape = 'u8[1024]{0}', space=vmem, size = 0x400, scoped, tag = 'output window, operand 1, single buffered']
    #allocation9 [shape = 's32[1]{0}', space=sflag, size = 0x4, scoped, tag = 'scoped memory for forward.1']
    %18 = vsyncpa [#allocation6], 0
    %19 = vsyncpa [#allocation5], 0
    %20 = vsyncpa [#allocation9], 0
    // Predicated region
    $region2: #{forward.1} parent=1 // pred_check
      _
    $region3: #{forward.1} parent=1 // pred_check_branch
      %22 = sbr.rel (0) target = $region5
    $region4: #{forward.1} parent=1 // pred_region
      %s24 = ssub.s32 16, 16
      %25 = vsyncadd [#allocation6], %s24
      %s27 = sshll.u32 %s0, 4
      %s28 = int_to_ptr.vmem [resolvable:$true] %s27
      %30 = dma.vmem_to_smem %s28, 16, [#allocation4], [#allocation6]
    $region5: #{forward.1} parent=1 // pred_fallthru
      _
    // Predicated region
    $region6: #{forward.1} parent=1 // pred_check
      _
    $region7: #{forward.1} parent=1 // pred_check_branch
      %32 = sbr.rel (0) target = $region9
    $region8: #{forward.1} parent=1 // pred_region
      _
    $region9: #{forward.1} parent=1 // pred_fallthru
      _
    // Predicated region
    $region10: #{forward.1} parent=1 // pred_check
      _
    $region11: #{forward.1} parent=1 // pred_check_branch
      %34 = sbr.rel (0) target = $region13
    $region12: #{forward.1} parent=1 // pred_region
      _
    $region13: #{forward.1} parent=1 // pred_fallthru
      _
    // Predicated region
    $region14: #{forward.1} parent=1 // pred_check
      _
    $region15: #{forward.1} parent=1 // pred_check_branch
      %36 = sbr.rel (0) target = $region17
    $region16: #{forward.1} parent=1 // pred_region
      _
    $region17: #{forward.1} parent=1 // pred_fallthru
      _
    // Predicated region
    $region18: #{forward.1} parent=1 // pred_check
      _
    $region19: #{forward.1} parent=1 // pred_check_branch
      %38 = sbr.rel (0) target = $region21
    $region20: #{forward.1} parent=1 // pred_region
      _
    $region21: #{forward.1} parent=1 // pred_fallthru
      _
    // Predicated region
    $region22: #{forward.1} parent=1 // pred_check
      _
    $region23: #{forward.1} parent=1 // pred_check_branch
      %40 = sbr.rel (0) target = $region25
    $region24: #{forward.1} parent=1 // pred_region
      _
    $region25: #{forward.1} parent=1 // pred_fallthru
      _
    // Predicated region
    $region26: #{forward.1} parent=1 // pred_check
      _
    $region27: #{forward.1} parent=1 // pred_check_branch
      %42 = sbr.rel (0) target = $region29
    $region28: #{forward.1} parent=1 // pred_region
      _
    $region29: #{forward.1} parent=1 // pred_fallthru
      _
    // Predicated region
    $region30: #{forward.1} parent=1 // pred_check
      _
    $region31: #{forward.1} parent=1 // pred_check_branch
      %44 = sbr.rel (0) target = $region33
    $region32: #{forward.1} parent=1 // pred_region
      _
    $region33: #{forward.1} parent=1 // pred_fallthru
      _
    // Predicated region
    $region34: #{forward.1} parent=1 // pred_check
      _
    $region35: #{forward.1} parent=1 // pred_check_branch
      %46 = sbr.rel (0) target = $region37
    $region36: #{forward.1} parent=1 // pred_region
      _
    $region37: #{forward.1} parent=1 // pred_fallthru
      _
    // Predicated region
    $region38: #{forward.1} parent=1 // pred_check
      _
    $region39: #{forward.1} parent=1 // pred_check_branch
      %48 = sbr.rel (0) target = $region41
    $region40: #{forward.1} parent=1 // pred_region
      _
    $region41: #{forward.1} parent=1 // pred_fallthru
      _
    // Predicated region
    $region42: #{forward.1} parent=1 // pred_check
      _
    $region43: #{forward.1} parent=1 // pred_check_branch
      %50 = sbr.rel (0) target = $region45
    $region44: #{forward.1} parent=1 // pred_region
      %51 = dma.done [#allocation6], 16
    $region45: #{forward.1} parent=1 // pred_fallthru
      _
    %52 = sfence
    %s54 = sld [smem:[#allocation4]]
    %s55 = smul.addr %s54, 16
    %s56 = scalar_lea.hbm %s3, %s55
    // Predicated region
    $region46: #{forward.1} parent=1 // pred_check
      _
    $region47: #{forward.1} parent=1 // pred_check_branch
      %58 = sbr.rel target = $region49
    $region48: #{forward.1} parent=1 // pred_region
      %59 = sst [smem:[#allocation12]] [#allocation11]
      %60 = sst [smem:[#allocation13]] [#allocation10]
    $region49: #{forward.1} parent=1 // pred_fallthru
      _
    %62 = shalt.err (0)
    %s64 = sshll.u32 [#allocation2], 4
    %s65 = int_to_ptr.vmem [resolvable:$true] %s64
    %67 = dma.hbm_to_vmem [thread:$0]  %s56, 16, %s65, [#allocation3]
    %s68 = sld [smem:[#allocation4 + $0x1]]
    %s69 = smul.addr %s68, 16
    %s70 = scalar_lea.hbm %s3, %s69
    %s71 = scalar_lea.vmem [#allocation2], 1
    %s72 = scalar_lea.sflag [#allocation3], 1
    // Predicated region
    $region50: #{forward.1} parent=1 // pred_check
      _
    $region51: #{forward.1} parent=1 // pred_check_branch
      %74 = sbr.rel target = $region53
    $region52: #{forward.1} parent=1 // pred_region
      %75 = sst [smem:[#allocation12]] [#allocation15]
      %76 = sst [smem:[#allocation13]] [#allocation14]
    $region53: #{forward.1} parent=1 // pred_fallthru
      _
    %78 = shalt.err (0)
    %s80 = sshll.u32 %s71, 4
    %s81 = int_to_ptr.vmem [resolvable:$true] %s80
    %83 = dma.hbm_to_vmem [thread:$0]  %s70, 16, %s81, %s72
    %s84 = smul.u32 1, 1
    %s85 = sshll.u32 %s84, 4
    %86 = dma.done [#allocation3], %s85
    %s87 = sshll.u32 %s84, 4
    %88 = dma.done %s72, %s87
    %v89 = vld [vmem:[%s1] sm:$0x3]
    %v90 = vld [vmem:[#allocation2] sm:$0x3]
    %v91 = vld [vmem:[%s2] sm:$0x3]
    %v92 = vpack.c.bf16 %v89, %v89
    %v93 = vld [vmem:[%s4] sm:$0xf]
    %v94 = vld [vmem:[%s4 + $0x4] sm:$0xf]
    %v95 = vld [vmem:[%s4 + $0x8] sm:$0xf]
    %v96 = vld [vmem:[%s4 + $0xc] sm:$0xf]
    %v97 = vpack.c.bf16 %v90, %v90
    %v98 = vld [vmem:[%s5] sm:$0xf]
    %v99 = vld [vmem:[%s5 + $0x4] sm:$0xf]
    %v100 = vld [vmem:[%s5 + $0x8] sm:$0xf]
    %v101 = vld [vmem:[%s5 + $0xc] sm:$0xf]
    %v106 = vunpack.c.l.b16 %v98
    %v107 = vunpack.c.l.b16 %v99
    %v108 = vunpack.c.l.b16 %v100
    %v109 = vunpack.c.l.b16 %v101
    %v110 = vpack.c.b16 %v107, %v106
    %v111 = vpack.c.b16 %v109, %v108
    %vm114 = vcmask 261120
    %v116 = vsel %vm114, %v97, 0
    %118 = vmatprep.subr.bf16.mxu0 0
    %119 = vmatpush1.bf16.msra.mxu0 %v110
    %120 = vmatprep.subr.bf16.mxu0 0
    %121 = vmatpush1.bf16.msra.mxu0 %v111
    %122 = vmatprep.subr.bf16.mxu0 0
    %123 = vmatpush1.bf16.msra.mxu0 0
    %124 = vmatprep.subr.bf16.mxu0 0
    %125 = vmatpush1.bf16.msra.mxu0 0
    %126 = vmatprep.subr.bf16.mxu0 0
    %127 = vmatpush1.bf16.msra.mxu0 0
    %128 = vmatprep.subr.bf16.mxu0 0
    %129 = vmatpush1.bf16.msra.mxu0 0
    %130 = vmatprep.subr.bf16.mxu0 0
    %131 = vmatpush1.bf16.msra.mxu0 0
    %132 = vmatprep.subr.bf16.mxu0 0
    %133 = vmatpush1.bf16.msra.mxu0 0
    %134 = vmatprep.subr.bf16.mxu0 0
    %135 = vmatpush1.bf16.msra.mxu0 0
    %136 = vmatprep.subr.bf16.mxu0 0
    %137 = vmatpush1.bf16.msra.mxu0 0
    %138 = vmatprep.subr.bf16.mxu0 0
    %139 = vmatpush1.bf16.msra.mxu0 0
    %140 = vmatprep.subr.bf16.mxu0 0
    %141 = vmatpush1.bf16.msra.mxu0 0
    %142 = vmatprep.subr.bf16.mxu0 0
    %143 = vmatpush1.bf16.msra.mxu0 0
    %144 = vmatprep.subr.bf16.mxu0 0
    %145 = vmatpush1.bf16.msra.mxu0 0
    %146 = vmatprep.subr.bf16.mxu0 0
    %147 = vmatpush1.bf16.msra.mxu0 0
    %148 = vmatprep.subr.bf16.mxu0 0
    %149 = vmatpush1.bf16.msra.mxu0 0
    %150 = vmatprep.mubr.bf16.mxu0 0
    %151 = vmatmul.mubr.bf16.gmra.mrb[0].mxu0 %v116
    %v152 = vpop.f32.mrb[0].mxu0
    %v153 = vadd.f32 0.0, %v152
    %v154 = vpop.f32.mrb[0].mxu0
    %v155 = vpop.f32.mrb[0].mxu0
    %v156 = vpop.f32.mrb[0].mxu0
    %157 = vdwg.mxu0
    %v162 = vunpack.c.l.b16 %v93
    %v163 = vunpack.c.l.b16 %v94
    %v164 = vunpack.c.l.b16 %v95
    %v165 = vunpack.c.l.b16 %v96
    %v166 = vpack.c.b16 %v163, %v162
    %v167 = vpack.c.b16 %v165, %v164
    %v171 = vsel %vm114, %v92, 0
    %173 = vmatprep.subr.bf16.mxu0 0
    %174 = vmatpush1.bf16.msra.mxu0 %v166
    %175 = vmatprep.subr.bf16.mxu0 0
    %176 = vmatpush1.bf16.msra.mxu0 %v167
    %177 = vmatprep.subr.bf16.mxu0 0
    %178 = vmatpush1.bf16.msra.mxu0 0
    %179 = vmatprep.subr.bf16.mxu0 0
    %180 = vmatpush1.bf16.msra.mxu0 0
    %181 = vmatprep.subr.bf16.mxu0 0
    %182 = vmatpush1.bf16.msra.mxu0 0
    %183 = vmatprep.subr.bf16.mxu0 0
    %184 = vmatpush1.bf16.msra.mxu0 0
    %185 = vmatprep.subr.bf16.mxu0 0
    %186 = vmatpush1.bf16.msra.mxu0 0
    %187 = vmatprep.subr.bf16.mxu0 0
    %188 = vmatpush1.bf16.msra.mxu0 0
    %189 = vmatprep.subr.bf16.mxu0 0
    %190 = vmatpush1.bf16.msra.mxu0 0
    %191 = vmatprep.subr.bf16.mxu0 0
    %192 = vmatpush1.bf16.msra.mxu0 0
    %193 = vmatprep.subr.bf16.mxu0 0
    %194 = vmatpush1.bf16.msra.mxu0 0
    %195 = vmatprep.subr.bf16.mxu0 0
    %196 = vmatpush1.bf16.msra.mxu0 0
    %197 = vmatprep.subr.bf16.mxu0 0
    %198 = vmatpush1.bf16.msra.mxu0 0
    %199 = vmatprep.subr.bf16.mxu0 0
    %200 = vmatpush1.bf16.msra.mxu0 0
    %201 = vmatprep.subr.bf16.mxu0 0
    %202 = vmatpush1.bf16.msra.mxu0 0
    %203 = vmatprep.subr.bf16.mxu0 0
    %204 = vmatpush1.bf16.msra.mxu0 0
    %205 = vmatprep.mubr.bf16.mxu0 0
    %206 = vmatmul.mubr.bf16.gmra.mrb[0].mxu0 %v171
    %v207 = vpop.f32.mrb[0].mxu0
    %v208 = vadd.f32 %v153, %v207
    %v209 = vpop.f32.mrb[0].mxu0
    %v210 = vpop.f32.mrb[0].mxu0
    %v211 = vpop.f32.mrb[0].mxu0
    %212 = vdwg.mxu0
    %v213 = vld [vmem:[%s6] sm:$0x1]
    %v215 = vlaneseq
    %v216 = vshrl.u32 %v215, 7
    %v217 = vsub.s32 0, %v216
    %v218 = vrot.slane %v213, %v217
    %v220 = vadd.f32 %v208, %v218
    %v221 = vld [vmem:[%s8] sm:$0xf]
    %v222 = vld [vmem:[%s8 + $0x4] sm:$0xf]
    %v223 = vld [vmem:[%s8 + $0x8] sm:$0xf]
    %v224 = vld [vmem:[%s8 + $0xc] sm:$0xf]
    %v225 = vunpack.c.l.bf16 %v221
    %v226 = vunpack.c.l.bf16 %v222
    %v227 = vunpack.c.l.bf16 %v223
    %v228 = vunpack.c.l.bf16 %v224
    %v230 = vsel %vm114, %v91, 0
    %232 = vmatprep.subr.mxu0 0.0
    %233 = vmatpush1.msra.mxu0 %v225
    %234 = vmatprep.subr.mxu0 0.0
    %235 = vmatpush1.msra.mxu0 %v226
    %236 = vmatprep.subr.mxu0 0.0
    %237 = vmatpush1.msra.mxu0 %v227
    %238 = vmatprep.subr.mxu0 0.0
    %239 = vmatpush1.msra.mxu0 %v228
    %240 = vmatprep.subr.mxu0 0.0
    %241 = vmatpush1.msra.mxu0 0.0
    %242 = vmatprep.subr.mxu0 0.0
    %243 = vmatpush1.msra.mxu0 0.0
    %244 = vmatprep.subr.mxu0 0.0
    %245 = vmatpush1.msra.mxu0 0.0
    %246 = vmatprep.subr.mxu0 0.0
    %247 = vmatpush1.msra.mxu0 0.0
    %248 = vmatprep.subr.mxu0 0.0
    %249 = vmatpush1.msra.mxu0 0.0
    %250 = vmatprep.subr.mxu0 0.0
    %251 = vmatpush1.msra.mxu0 0.0
    %252 = vmatprep.subr.mxu0 0.0
    %253 = vmatpush1.msra.mxu0 0.0
    %254 = vmatprep.subr.mxu0 0.0
    %255 = vmatpush1.msra.mxu0 0.0
    %256 = vmatprep.subr.mxu0 0.0
    %257 = vmatpush1.msra.mxu0 0.0
    %258 = vmatprep.subr.mxu0 0.0
    %259 = vmatpush1.msra.mxu0 0.0
    %260 = vmatprep.subr.mxu0 0.0
    %261 = vmatpush1.msra.mxu0 0.0
    %262 = vmatprep.subr.mxu0 0.0
    %263 = vmatpush1.msra.mxu0 0.0
    %264 = vmatprep.subr.mxu0 0.0
    %265 = vmatpush1.msra.mxu0 0.0
    %266 = vmatprep.subr.mxu0 0.0
    %267 = vmatpush1.msra.mxu0 0.0
    %268 = vmatprep.subr.mxu0 0.0
    %269 = vmatpush1.msra.mxu0 0.0
    %270 = vmatprep.subr.mxu0 0.0
    %271 = vmatpush1.msra.mxu0 0.0
    %272 = vmatprep.subr.mxu0 0.0
    %273 = vmatpush1.msra.mxu0 0.0
    %274 = vmatprep.subr.mxu0 0.0
    %275 = vmatpush1.msra.mxu0 0.0
    %276 = vmatprep.subr.mxu0 0.0
    %277 = vmatpush1.msra.mxu0 0.0
    %278 = vmatprep.subr.mxu0 0.0
    %279 = vmatpush1.msra.mxu0 0.0
    %280 = vmatprep.subr.mxu0 0.0
    %281 = vmatpush1.msra.mxu0 0.0
    %282 = vmatprep.subr.mxu0 0.0
    %283 = vmatpush1.msra.mxu0 0.0
    %284 = vmatprep.subr.mxu0 0.0
    %285 = vmatpush1.msra.mxu0 0.0
    %286 = vmatprep.subr.mxu0 0.0
    %287 = vmatpush1.msra.mxu0 0.0
    %288 = vmatprep.subr.mxu0 0.0
    %289 = vmatpush1.msra.mxu0 0.0
    %290 = vmatprep.subr.mxu0 0.0
    %291 = vmatpush1.msra.mxu0 0.0
    %292 = vmatprep.subr.mxu0 0.0
    %293 = vmatpush1.msra.mxu0 0.0
    %294 = vmatprep.subr.mxu0 0.0
    %295 = vmatpush1.msra.mxu0 0.0
    %296 = vmatprep.mubr.f32.mxu0 0.0
    %297 = vmatmul.mubr.f32.gmra.mrb[0].mxu0 %v230
    %v298 = vpop.f32.mrb[0].mxu0
    %v299 = vadd.f32 0.0, %v298
    %v300 = vpop.f32.mrb[0].mxu0
    %301 = vdwg.mxu0
    %v302 = vadd.f32 %v220, %v299
    %v303 = vxor.u32 %v302, 2147483648
    %v304 = vmul.f32 %v303, 1.442695
    %v305 = vpow.pop %v304
    %v306 = vadd.f32 %v305, 1.0
    %v307 = vrcp.pop %v306
    %v308 = vmul.f32 1.0, %v307
    %v309 = vld [vmem:[%s7] sm:$0x1]
    %v311 = vlaneseq
    %v312 = vshrl.u32 %v311, 7
    %v313 = vsub.s32 0, %v312
    %v314 = vrot.slane %v309, %v313
    %315 = vrot.lane.b32.xlu0 %v314, 64
    %v316 = vpop.permute.xlu0 %315
    %v318 = vadd.f32 %v299, %v316
    %320 = vrot.lane.b32.xlu0 %v318, 64
    %v321 = vpop.permute.xlu0 %320
    %v323 = vmul.f32 %v308, %v321
    %325 = vrot.lane.b32.xlu0 %v323, 64
    %v326 = vpop.permute.xlu0 %325
    %v328 = vadd.f32 %v220, %v326
    %v329 = vtanh.pop %v328
    %v330 = vsub.f32 1.0, %v308
    %332 = vrot.lane.b32.xlu0 %v329, 96
    %v333 = vpop.permute.xlu0 %332
    %v335 = vmul.f32 %v330, %v333
    %336 = vrot.lane.b32.xlu0 %v91, 32
    %v337 = vpop.permute.xlu0 %336
    %v339 = vmul.f32 %v308, %v337
    %v340 = vadd.f32 %v335, %v339
    %342 = vrot.lane.b32.xlu0 %v340, 96
    %v343 = vpop.permute.xlu0 %342
    %vm345 = vcmask 254976
    %346 = vst.msk [vmem:[#allocation8] sm:$0x3] %vm345, %v343
    %v347 = vpack.c.bf16 %v340, %v340
    %v348 = vld [vmem:[%s9] sm:$0xff]
    %v349 = vld [vmem:[%s9 + $0x8] sm:$0xff]
    %v350 = vld [vmem:[%s9 + $0x10] sm:$0xff]
    %v351 = vld [vmem:[%s9 + $0x18] sm:$0xff]
    %v352 = vld [vmem:[%s10] sm:$0x3]
    %v354 = vlaneseq
    %v355 = vshrl.u32 %v354, 7
    %v356 = vsub.s32 0, %v355
    %v357 = vrot.slane %v352, %v356
    %v358 = vlaneseq
    %v359 = vshrl.u32 %v358, 7
    %v360 = vsub.s32 1, %v359
    %v361 = vrot.slane %v352, %v360
    %365 = vrot.lane.b32.xlu0 %v347, 96
    %v366 = vpop.permute.xlu0 %365
    %v371 = vunpack.c.l.b16 %v348
    %v372 = vunpack.c.h.b16 %v348
    %v373 = vunpack.c.l.b16 %v349
    %v374 = vunpack.c.h.b16 %v349
    %v375 = vunpack.c.l.b16 %v350
    %v376 = vunpack.c.h.b16 %v350
    %v377 = vunpack.c.l.b16 %v351
    %v378 = vunpack.c.h.b16 %v351
    %v379 = vpack.c.b16 %v373, %v371
    %v380 = vpack.c.b16 %v374, %v372
    %v381 = vpack.c.b16 %v377, %v375
    %v382 = vpack.c.b16 %v378, %v376
    %v388 = vsel %vm114, %v366, 0
    %390 = vmatprep.subr.bf16.mxu0 %v380
    %391 = vmatpush1.bf16.msra.mxu0 %v379
    %392 = vmatprep.subr.bf16.mxu0 %v382
    %393 = vmatpush1.bf16.msra.mxu0 %v381
    %394 = vmatprep.subr.bf16.mxu0 0
    %395 = vmatpush1.bf16.msra.mxu0 0
    %396 = vmatprep.subr.bf16.mxu0 0
    %397 = vmatpush1.bf16.msra.mxu0 0
    %398 = vmatprep.subr.bf16.mxu0 0
    %399 = vmatpush1.bf16.msra.mxu0 0
    %400 = vmatprep.subr.bf16.mxu0 0
    %401 = vmatpush1.bf16.msra.mxu0 0
    %402 = vmatprep.subr.bf16.mxu0 0
    %403 = vmatpush1.bf16.msra.mxu0 0
    %404 = vmatprep.subr.bf16.mxu0 0
    %405 = vmatpush1.bf16.msra.mxu0 0
    %406 = vmatprep.subr.bf16.mxu0 0
    %407 = vmatpush1.bf16.msra.mxu0 0
    %408 = vmatprep.subr.bf16.mxu0 0
    %409 = vmatpush1.bf16.msra.mxu0 0
    %410 = vmatprep.subr.bf16.mxu0 0
    %411 = vmatpush1.bf16.msra.mxu0 0
    %412 = vmatprep.subr.bf16.mxu0 0
    %413 = vmatpush1.bf16.msra.mxu0 0
    %414 = vmatprep.subr.bf16.mxu0 0
    %415 = vmatpush1.bf16.msra.mxu0 0
    %416 = vmatprep.subr.bf16.mxu0 0
    %417 = vmatpush1.bf16.msra.mxu0 0
    %418 = vmatprep.subr.bf16.mxu0 0
    %419 = vmatpush1.bf16.msra.mxu0 0
    %420 = vmatprep.subr.bf16.mxu0 0
    %421 = vmatpush1.bf16.msra.mxu0 0
    %422 = vmatprep.mubr.bf16.mxu0 0
    %423 = vmatmul.mubr.bf16.gmra.mrb[0].mxu0 %v388
    %v424 = vpop.f32.mrb[0].mxu0
    %v425 = vadd.f32 %v357, %v424
    %v426 = vpop.f32.mrb[0].mxu0
    %v427 = vadd.f32 %v361, %v426
    %v428 = vpop.f32.mrb[0].mxu0
    %v429 = vpop.f32.mrb[0].mxu0
    %430 = vdwg.mxu0
    %vm431 = vcmask 1041408
    %v432 = vsel %vm431, %v425, -inf
    %v433 = vsel %vm431, %v427, -inf
    %v434 = vmax.f32 %v432, %v433
    %435 = vmax.xlane.f32.xlu0 %v434
    %v436 = vpop.xlane.xlu0 %435
    %v437 = vsub.f32 %v425, %v436
    %v438 = vsub.f32 %v427, %v436
    %v439 = vmul.f32 %v437, 1.442695
    %v440 = vpow.pop %v439
    %v441 = vmul.f32 %v438, 1.442695
    %v442 = vpow.pop %v441
    %v443 = vsel %vm431, %v440, 0.0
    %v444 = vsel %vm431, %v442, 0.0
    %v445 = vadd.f32 %v443, %v444
    %446 = vadd.xlane.f32.xlu0 %v445
    %v447 = vpop.xlane.xlu0 %446
    %v448 = vlog2.pop %v447
    %v449 = vmul.f32 %v448, 0.6931472
    %v450 = vsub.f32 %v437, %v449
    %v451 = vsub.f32 %v438, %v449
    %v454 = vcombine.low %v450, %v451
    %v456 = vunpack.c.l.s4 1983009808
    %v457 = vunpack.c.0.s8 %v456
    %v458 = vlaneseq
    %v459 = vshrl.u32 %v458, 7
    %v460 = vsub.s32 %v457, %v459
    %v461 = vrot.slane %v454, %v460
    %463 = vst [vmem:[#allocation7] sm:$0xf] %v461
    // Predicated region
    $region54: #{forward.1} parent=1 // pred_check
      _
    $region55: #{forward.1} parent=1 // pred_check_branch
      %465 = sbr.rel (0) target = $region57
    $region56: #{forward.1} parent=1 // pred_region
      %s467 = ssub.s32 64, 64
      %468 = vsyncadd [#allocation5], %s467
      %s470 = sshll.u32 [#allocation7], 4
      %s471 = int_to_ptr.vmem [resolvable:$true] %s470
      %473 = dma.vmem_to_hbm [thread:$0]  %s471, 64, %s11, [#allocation5]
    $region57: #{forward.1} parent=1 // pred_fallthru
      _
    // Predicated region
    $region58: #{forward.1} parent=1 // pred_check
      _
    $region59: #{forward.1} parent=1 // pred_check_branch
      %475 = sbr.rel (0) target = $region61
    $region60: #{forward.1} parent=1 // pred_region
      %s477 = ssub.s32 32, 32
      %478 = vsyncadd [#allocation9], %s477
      %s480 = sshll.u32 [#allocation8], 4
      %s481 = int_to_ptr.vmem [resolvable:$true] %s480
      %483 = dma.vmem_to_hbm [thread:$0]  %s481, 32, %s12, [#allocation9]
    $region61: #{forward.1} parent=1 // pred_fallthru
      _
    // Predicated region
    $region62: #{forward.1} parent=1 // pred_check
      _
    $region63: #{forward.1} parent=1 // pred_check_branch
      %485 = sbr.rel (0) target = $region65
    $region64: #{forward.1} parent=1 // pred_region
      %486 = dma.done [#allocation5], 64
    $region65: #{forward.1} parent=1 // pred_fallthru
      _
    // Predicated region
    $region66: #{forward.1} parent=1 // pred_check
      _
    $region67: #{forward.1} parent=1 // pred_check_branch
      %488 = sbr.rel (0) target = $region69
    $region68: #{forward.1} parent=1 // pred_region
      %489 = dma.done [#allocation9], 32
    $region69: #{forward.1} parent=1 // pred_fallthru
      _
    %490 = vsyncpa [#allocation5], 1
    %491 = vsyncpa [#allocation9], 1
    %492 = vsyncpa [#allocation6], 1
  %493 = vsyncmov [#allocation3]
  %s494 = vpop.sfrf %493
  %p495 = scmp.eq.s32.totalorder %s494, 0
  %p496 = pneg %p495
  %498 = shalt.err (%p496)
  %s499 = scalar_lea.sflag [#allocation3], 1
  %500 = vsyncmov %s499
  %s501 = vpop.sfrf %500
  %p502 = scmp.eq.s32.totalorder %s501, 0
  %p503 = pneg %p502
  %505 = shalt.err (%p503)

</llo_original>
